<compile_context>
chip_gen: v7x
topology: tpu7x:2x2x1
jax: 0.10.0
libtpu: 0.0.40
codegen_flags: <defaults>
</compile_context>

<pallas_src>
import jax
import jax.numpy as jnp
from jax.experimental import pallas as pl
from jax.experimental.pallas import tpu as pltpu


def _linear_sigmoid_kernel(x_ref, w_ref, b_ref, o_ref):
    # x_ref: (TB, K) VMEM, w_ref: (1, K) VMEM, b_ref: (1, 1) SMEM, o_ref: (TB, 1)
    x = x_ref[...]                      # (TB, K)
    w = w_ref[...]                      # (1, K), broadcast over sublanes
    b = b_ref[0, 0]                     # scalar bias from SMEM
    # GEMV with N=1 on the VPU: elementwise multiply + cross-lane reduce (XLU).
    y = jnp.sum(x * w, axis=-1, keepdims=True) + b        # (TB, 1) f32
    # sigmoid(y) = 1 / (1 + exp(-y))   (exp on EUP)
    o_ref[...] = (1.0 / (1.0 + jnp.exp(-y))).astype(o_ref.dtype)


def model_2_1_forward(x, weight, bias, *, tile_b=None):
    """x: (B, 500) f32; weight: (1, 500) f32; bias: (1,) f32 -> (B, 1) f32."""
    x = x.astype(jnp.float32)
    weight = weight.astype(jnp.float32)
    bias = bias.astype(jnp.float32)

    B, in_f = x.shape
    out_f = weight.shape[0]             # = 1

    # --- pad K to a multiple of 128 (500 -> 512), zeros so the dot is unchanged ---
    k_pad = (-in_f) % 128
    if k_pad:
        x = jnp.pad(x, ((0, 0), (0, k_pad)))
        weight = jnp.pad(weight, ((0, 0), (0, k_pad)))
    in_fp = in_f + k_pad

    # --- choose batch tile: multiple of 8, capped so double-buffering fits
    #     comfortably in every generation's scoped VMEM (2048*512*4B = 4 MB/buf) ---
    if tile_b is None:
        tile_b = min(((B + 7) // 8) * 8, 2048)

    # --- pad batch to a multiple of the tile; padded rows are zeros and sliced off ---
    b_pad = (-B) % tile_b
    if b_pad:
        x = jnp.pad(x, ((0, b_pad), (0, 0)))
    Bp = B + b_pad
    grid = (Bp // tile_b,)

    bias_smem = bias.reshape(1, out_f)  # (1, 1) scalar -> SMEM

    out = pl.pallas_call(
        _linear_sigmoid_kernel,
        out_shape=jax.ShapeDtypeStruct((Bp, out_f), jnp.float32),
        grid_spec=pltpu.PrefetchScalarGridSpec(
            num_scalar_prefetch=0,
            grid=grid,
            in_specs=[
                # x: one batch tile per grid step (pipelined / double-buffered)
                pl.BlockSpec((tile_b, in_fp), lambda i: (i, 0)),
                # weight: tiny, full block, re-used every step
                pl.BlockSpec((out_f, in_fp), lambda i: (0, 0)),
                # bias: single scalar in SMEM
                pl.BlockSpec(memory_space=pltpu.MemorySpace.SMEM),
            ],
            out_specs=pl.BlockSpec((tile_b, out_f), lambda i: (i, 0)),
        ),
        compiler_params=pltpu.CompilerParams(
            dimension_semantics=("parallel",),
        ),
    )(x, weight, bias_smem)

    return out[:B]


if __name__ == "__main__":
    key = jax.random.PRNGKey(0)
    kx, kw, kb = jax.random.split(key, 3)

    B, IN, OUT = 8, 500, 1
    x = jax.random.normal(kx, (B, IN), dtype=jnp.float32)

    # Deterministic init mimicking torch.nn.Linear's uniform(-1/sqrt(in), 1/sqrt(in))
    bound = 1.0 / (IN ** 0.5)
    weight = jax.random.uniform(kw, (OUT, IN), minval=-bound, maxval=bound,
                                dtype=jnp.float32)
    bias = jax.random.uniform(kb, (OUT,), minval=-bound, maxval=bound,
                              dtype=jnp.float32)

    out = model_2_1_forward(x, weight, bias)
    jax.block_until_ready(out)

    # reference check in plain JAX
    ref = jax.nn.sigmoid(x @ weight.T + bias)
    assert out.shape == (B, OUT)
    assert jnp.allclose(out, ref, atol=1e-5, rtol=1e-5), (
        f"max abs err = {jnp.max(jnp.abs(out - ref))}")

    # also exercise a batch that is not a multiple of the tile / 8
    B2 = 37
    x2 = jax.random.normal(jax.random.PRNGKey(1), (B2, IN), dtype=jnp.float32)
    out2 = model_2_1_forward(x2, weight, bias)
    jax.block_until_ready(out2)
    ref2 = jax.nn.sigmoid(x2 @ weight.T + bias)
    assert out2.shape == (B2, OUT)
    assert jnp.allclose(out2, ref2, atol=1e-5, rtol=1e-5)

    print("KERNEL_OK")
</pallas_src>

<mosaic_0001>
module attributes {stable_mosaic.version = 11 : i64} {
  func.func @_linear_sigmoid_kernel(%arg0: i32, %arg1: memref<8x512xf32, #tpu.memory_space<vmem>>, %arg2: memref<1x512xf32, #tpu.memory_space<vmem>>, %arg3: memref<1x1xf32, #tpu.memory_space<smem>>, %arg4: memref<8x1xf32, #tpu.memory_space<vmem>>) attributes {dimension_semantics = [#tpu.dimension_semantics<parallel>], iteration_bounds = array<i64: 1>, scalar_prefetch = 0 : i64, scratch_operands = 0 : i64, tpu.core_type = #tpu.core_type<tc>, window_params = [{transform_indices = @transform_0, window_bounds = array<i64: 8, 512>}, {pipeline_mode = #tpu.pipeline_mode<synchronous>, transform_indices = @transform_1, window_bounds = array<i64: 1, 512>}, {transform_indices = @transform_2, window_bounds = array<i64: 1, 1>}, {transform_indices = @transform_3, window_bounds = array<i64: 8, 1>}]} {
    %c0 = arith.constant 0 : index
    %c0_0 = arith.constant 0 : index
    %0 = vector.load %arg1[%c0, %c0_0] : memref<8x512xf32, #tpu.memory_space<vmem>>, vector<8x512xf32>
    %c0_1 = arith.constant 0 : index
    %c0_2 = arith.constant 0 : index
    %1 = vector.load %arg2[%c0_1, %c0_2] : memref<1x512xf32, #tpu.memory_space<vmem>>, vector<1x512xf32>
    %c0_3 = arith.constant 0 : index
    %c0_4 = arith.constant 0 : index
    %2 = memref.load %arg3[%c0_3, %c0_4] : memref<1x1xf32, #tpu.memory_space<smem>>
    %3 = vector.broadcast %1 : vector<1x512xf32> to vector<8x512xf32>
    %4 = arith.mulf %0, %3 : vector<8x512xf32>
    %cst = arith.constant dense<0.000000e+00> : vector<8xf32>
    %5 = vector.multi_reduction <add>, %4, %cst [1] : vector<8x512xf32> to vector<8xf32>
    %6 = vector.shape_cast %5 : vector<8xf32> to vector<8x1xf32>
    %7 = vector.broadcast %2 : f32 to vector<8x1xf32>
    %8 = arith.addf %6, %7 : vector<8x1xf32>
    %cst_5 = arith.constant 0.000000e+00 : f32
    %9 = vector.broadcast %cst_5 : f32 to vector<8x1xf32>
    %10 = arith.subf %9, %8 : vector<8x1xf32>
    %11 = math.exp %10 : vector<8x1xf32>
    %cst_6 = arith.constant 1.000000e+00 : f32
    %12 = vector.broadcast %cst_6 : f32 to vector<8x1xf32>
    %13 = arith.addf %12, %11 : vector<8x1xf32>
    %cst_7 = arith.constant 1.000000e+00 : f32
    %14 = vector.broadcast %cst_7 : f32 to vector<8x1xf32>
    %15 = arith.divf %14, %13 : vector<8x1xf32>
    %c0_8 = arith.constant 0 : index
    %c0_9 = arith.constant 0 : index
    %16 = vector.load %arg4[%c0_8, %c0_9] : memref<8x1xf32, #tpu.memory_space<vmem>>, vector<8x1xf32>
    tpu.vector_store %arg4[%c0_8, %c0_9], %15 {strides = array<i32>} : memref<8x1xf32, #tpu.memory_space<vmem>>, vector<8x1xf32>,
    return
  }
  func.func @transform_0(%arg0: i32) -> (i32, i32) {
    %c0_i32 = arith.constant 0 : i32
    %c0_i32_0 = arith.constant 0 : i32
    return %arg0, %c0_i32 : i32, i32
  }
  func.func @transform_1(%arg0: i32) -> (i32, i32) {
    %c0_i32 = arith.constant 0 : i32
    %c0_i32_0 = arith.constant 0 : i32
    %c0_i32_1 = arith.constant 0 : i32
    return %c0_i32, %c0_i32_0 : i32, i32
  }
  func.func @transform_2(%arg0: i32) -> (i32, i32) {
    %c0_i32 = arith.constant 0 : i32
    %c0_i32_0 = arith.constant 0 : i32
    %c0_i32_1 = arith.constant 0 : i32
    return %c0_i32, %c0_i32_0 : i32, i32
  }
  func.func @transform_3(%arg0: i32) -> (i32, i32) {
    %c0_i32 = arith.constant 0 : i32
    %c0_i32_0 = arith.constant 0 : i32
    return %arg0, %c0_i32 : i32, i32
  }
}

</mosaic_0001>

<llo_original>
// kernel: tpu_custom_call.1
$region0: #{tpu_custom_call.1}
  #allocation0 [shape = 'u32[]', space=smem, size = 0x4, offset = 0x4, fixed_abs, tag = 'smem constant byte address 0x4 - core index']
  #allocation1 [shape = 'u32[144,128]{1,0:T(1,128)}', space=vmem, size = 0x12000, scoped, tag = 'internal scratch']
  #allocation2 [shape = 'f32[1,1]{1,0:T(1,128)S(6)}', space=smem, size = 0x200, scoped, tag = 'scoped memory for tpu_custom_call.1']
  %s0 = inlined_call_operand.hbm [shape: f32[8,512], index: 0, kind: input, shape index: {}]
  %s1 = inlined_call_operand.vmem [shape: f32[1,512], index: 1, kind: input, shape index: {}]
  %s2 = inlined_call_operand.<no memory space> [shape: f32[1,1], index: 2, kind: input, shape index: {}]
  %s3 = inlined_call_operand.vmem [shape: f32[8,1], index: 3, kind: output, shape index: {}]
  %s4 = sld [smem:[#allocation0]]
  $region26: #{tpu_custom_call.1} parent=0
    _
  %s6 = ssub.s32 1, %s4
  %s7 = scalar_select 0, %s6, %s4
  %8 = sst [smem:[#allocation2]] %s2
  $region1: #{tpu_custom_call.1} parent=0
    #allocation3 [shape = 'u8[16384]{0}', space=vmem, size = 0x4000, scoped, tag = 'input window, operand 0, single buffered']
    #allocation4 [shape = 's32[1]{0}', space=sflag, size = 0x4, scoped, tag = 'scoped memory for tpu_custom_call.1']
    %9 = vsyncpa [#allocation4], 0
    // Predicated region
    $region2: #{tpu_custom_call.1} parent=1 // pred_check
      _
    $region3: #{tpu_custom_call.1} parent=1 // pred_check_branch
      %11 = sbr.rel (0) target = $region5
    $region4: #{tpu_custom_call.1} parent=1 // pred_region
      %s13 = ssub.s32 512, 512
      %14 = vsyncadd [#allocation4], %s13
      %s16 = sshll.u32 [#allocation3], 4
      %s17 = int_to_ptr.vmem [resolvable:$true] %s16
      %19 = dma.hbm_to_vmem [thread:$0]  %s0, 512, %s17, [#allocation4]
    $region5: #{tpu_custom_call.1} parent=1 // pred_fallthru
      _
    // Predicated region
    $region6: #{tpu_custom_call.1} parent=1 // pred_check
      _
    $region7: #{tpu_custom_call.1} parent=1 // pred_check_branch
      %21 = sbr.rel (0) target = $region9
    $region8: #{tpu_custom_call.1} parent=1 // pred_region
      _
    $region9: #{tpu_custom_call.1} parent=1 // pred_fallthru
      _
    // Predicated region
    $region10: #{tpu_custom_call.1} parent=1 // pred_check
      _
    $region11: #{tpu_custom_call.1} parent=1 // pred_check_branch
      %23 = sbr.rel (0) target = $region13
    $region12: #{tpu_custom_call.1} parent=1 // pred_region
      _
    $region13: #{tpu_custom_call.1} parent=1 // pred_fallthru
      _
    // Predicated region
    $region14: #{tpu_custom_call.1} parent=1 // pred_check
      _
    $region15: #{tpu_custom_call.1} parent=1 // pred_check_branch
      %25 = sbr.rel (0) target = $region17
    $region16: #{tpu_custom_call.1} parent=1 // pred_region
      %26 = dma.done [#allocation4], 512
    $region17: #{tpu_custom_call.1} parent=1 // pred_fallthru
      _
    %v27 = vld [vmem:[#allocation3] sm:$0xff]
    %v28 = vld [vmem:[#allocation3 + $0x8] sm:$0xff]
    %v29 = vld [vmem:[#allocation3 + $0x10] sm:$0xff]
    %v30 = vld [vmem:[#allocation3 + $0x18] sm:$0xff]
    %v31 = vld [vmem:[%s1] sm:$0xf]
    %s32 = sld [smem:[#allocation2]]
    %v34 = vlaneseq
    %v35 = vshrl.u32 %v34, 7
    %v36 = vsub.s32 0, %v35
    %v37 = vrot.slane %v31, %v36
    %v38 = vlaneseq
    %v39 = vshrl.u32 %v38, 7
    %v40 = vsub.s32 1, %v39
    %v41 = vrot.slane %v31, %v40
    %v42 = vlaneseq
    %v43 = vshrl.u32 %v42, 7
    %v44 = vsub.s32 2, %v43
    %v45 = vrot.slane %v31, %v44
    %v46 = vlaneseq
    %v47 = vshrl.u32 %v46, 7
    %v48 = vsub.s32 3, %v47
    %v49 = vrot.slane %v31, %v48
    %v54 = vmul.f32 %v27, %v37
    %v55 = vmul.f32 %v28, %v41
    %v56 = vmul.f32 %v29, %v45
    %v57 = vmul.f32 %v30, %v49
    %v58 = vadd.f32 %v54, %v55
    %v59 = vadd.f32 %v58, %v56
    %v60 = vadd.f32 %v59, %v57
    %61 = vadd.xlane.f32.xlu0 %v60
    %v62 = vpop.xlane.xlu0 %61
    %v63 = vstv %s32
    %v64 = vadd.f32 %v62, %v63
    %v65 = vsub.f32 0.0, %v64
    %v66 = vmul.f32 %v65, 1.442695
    %v67 = vpow.pop %v66
    %v68 = vadd.f32 %v67, 1.0
    %v69 = vrcp.pop %v68
    %v70 = vmul.f32 1.0, %v69
    %vm71 = vcmask 7168
    %72 = vst.msk [vmem:[%s3] sm:$0xff] %vm71, %v70
    // Predicated region
    $region18: #{tpu_custom_call.1} parent=1 // pred_check
      _
    $region19: #{tpu_custom_call.1} parent=1 // pred_check_branch
      %74 = sbr.rel (0) target = $region21
    $region20: #{tpu_custom_call.1} parent=1 // pred_region
      _
    $region21: #{tpu_custom_call.1} parent=1 // pred_fallthru
      _
    // Predicated region
    $region22: #{tpu_custom_call.1} parent=1 // pred_check
      _
    $region23: #{tpu_custom_call.1} parent=1 // pred_check_branch
      %76 = sbr.rel (0) target = $region25
    $region24: #{tpu_custom_call.1} parent=1 // pred_region
      _
    $region25: #{tpu_custom_call.1} parent=1 // pred_fallthru
      _
    %77 = vsyncpa [#allocation4], 1

</llo_original>
